<compile_context>
chip_gen: v5e
topology: v5e:2x2
jax: 0.10.0
libtpu: 0.0.40
codegen_flags: <defaults>
</compile_context>

<pallas_src>
import functools
import math

import jax
import jax.numpy as jnp
from jax.experimental import pallas as pl
from jax.experimental.pallas import tpu as pltpu


_VMEM_LIMIT = 64 * 1024 * 1024          # <= physical VMEM on v5e/v6e/v7x
_GELU_C = math.sqrt(2.0 / math.pi)


# ------------------------------ tiling helpers ------------------------------

def _row_tile(M, target=256):
    """Largest row tile <= target that divides M (prefers sublane multiples of 8).

    Raises instead of silently using one huge block (review correctness concern)."""
    if M <= target:
        return M
    best8 = max((t for t in range(8, target + 1, 8) if M % t == 0), default=None)
    if best8 is not None:
        return best8
    best = max(t for t in range(1, target + 1) if M % t == 0)
    if best < 8:
        raise ValueError(
            f"M={M} has no usable row tile <= {target}; pad tokens to a multiple of 8/128.")
    return best


def _heads_per_group(num_heads, head_dim):
    """Heads per attention head-group; chosen so group width (hpg*head_dim) is a
    multiple of 128 lanes when possible, else all heads share one group."""
    for g in range(num_heads, 0, -1):
        if num_heads % g == 0 and ((num_heads // g) * head_dim) % 128 == 0:
            return num_heads // g
    return num_heads


# ----------------------------- Pallas kernels ------------------------------

def _linear_kernel(x_ref, w_ref, b_ref, o_ref):
    """y = x @ w + b; bf16 MXU operands, f32 accumulation, bf16 HBM output."""
    x = x_ref[...].astype(w_ref.dtype)
    y = jnp.dot(x, w_ref[...], preferred_element_type=jnp.float32) + b_ref[...]
    o_ref[...] = y.astype(o_ref.dtype)


def pallas_linear(x, w, b):
    """x: [M, K], w: [K, N] bf16, b: [N] f32 -> [M, N] bf16."""
    M, K = x.shape
    N = w.shape[1]
    tm = _row_tile(M)
    return pl.pallas_call(
        _linear_kernel,
        out_shape=jax.ShapeDtypeStruct((M, N), jnp.bfloat16),
        grid=(M // tm,),
        in_specs=[
            pl.BlockSpec((tm, K), lambda i: (i, 0)),
            pl.BlockSpec((K, N), lambda i: (0, 0)),   # weight resident across grid
            pl.BlockSpec((1, N), lambda i: (0, 0)),
        ],
        out_specs=pl.BlockSpec((tm, N), lambda i: (i, 0)),
        compiler_params=pltpu.CompilerParams(
            dimension_semantics=("parallel",),
            vmem_limit_bytes=_VMEM_LIMIT),
    )(x, w, b.reshape(1, N))


def _qkv_attn_kernel(x_ref, w_ref, b_ref, mask_ref, o_ref, *, hpg, head_dim, scale):
    """Fused QKV projection + attention for one (batch, head-group) block.

    x_ref: (1, S, H) bf16; w_ref: (1, H, 3G) bf16; b_ref: (1, 1, 3G) f32;
    mask_ref: (1, S) f32 additive; o_ref: (1, S, G) bf16, G = hpg*head_dim."""
    x = x_ref[0]                                            # (S, H) bf16
    qkv = jnp.dot(x, w_ref[0], preferred_element_type=jnp.float32) + b_ref[0]
    G = hpg * head_dim
    mask = mask_ref[...]                                    # (1, S), broadcast over rows
    ctx = []
    for h in range(hpg):                                    # short static unroll (2 at base)
        # fold 1/sqrt(d) into q (S*d mults) rather than scaling the (S,S) scores
        q = (qkv[:, h * head_dim:(h + 1) * head_dim] * scale).astype(jnp.bfloat16)
        k = qkv[:, G + h * head_dim: G + (h + 1) * head_dim].astype(jnp.bfloat16)
        v = qkv[:, 2 * G + h * head_dim: 2 * G + (h + 1) * head_dim].astype(jnp.bfloat16)
        s = jnp.dot(q, k.T, preferred_element_type=jnp.float32) + mask
        s = s - jnp.max(s, axis=-1, keepdims=True)
        p = jnp.exp(s)
        p = p * pl.reciprocal(jnp.sum(p, axis=-1, keepdims=True), approx=True)
        ctx.append(jnp.dot(p.astype(jnp.bfloat16), v, preferred_element_type=jnp.float32))
    # single lane-dense (S, G) store for the whole head group
    o_ref[0] = jnp.concatenate(ctx, axis=-1).astype(o_ref.dtype)


def pallas_qkv_attention(x, qkv_w, qkv_b, add_mask, num_heads, head_dim):
    """x: [B,S,H] bf16; qkv_w: [ng,H,3G] bf16 (head-group-major); qkv_b: [ng,1,3G] f32;
    add_mask: [B,S] f32 additive. Returns [B,S,H] bf16."""
    B, S, H = x.shape
    ng, _, threeG = qkv_w.shape
    G = threeG // 3
    hpg = num_heads // ng
    scale = 1.0 / math.sqrt(head_dim)
    return pl.pallas_call(
        functools.partial(_qkv_attn_kernel, hpg=hpg, head_dim=head_dim, scale=scale),
        out_shape=jax.ShapeDtypeStruct((B, S, H), jnp.bfloat16),
        grid=(B, ng),
        in_specs=[
            pl.BlockSpec((1, S, H), lambda b, g: (b, 0, 0)),       # resident across g
            pl.BlockSpec((1, H, threeG), lambda b, g: (g, 0, 0)),  # per-group weight slab
            pl.BlockSpec((1, 1, threeG), lambda b, g: (g, 0, 0)),
            pl.BlockSpec((1, S), lambda b, g: (b, 0)),
        ],
        out_specs=pl.BlockSpec((1, S, G), lambda b, g: (b, 0, g)),
        compiler_params=pltpu.CompilerParams(
            dimension_semantics=("parallel", "parallel"),
            vmem_limit_bytes=_VMEM_LIMIT),
    )(x, qkv_w, qkv_b, add_mask)


def _attn_out_ffn_ln_kernel(ctx_ref, res_ref,
                            adw_ref, adb_ref, g1_ref, be1_ref,
                            w1_ref, b1_ref, w2_ref, b2_ref, g2_ref, be2_ref,
                            o_ref, *, eps):
    """out = LN2( FFN_down(gelu_new(FFN_up(a))) + a ), a = LN1(ctx@adw + adb + resid)."""
    y = jnp.dot(ctx_ref[...], adw_ref[...], preferred_element_type=jnp.float32)
    y = y + adb_ref[...] + res_ref[...].astype(jnp.float32)
    mu = jnp.mean(y, axis=-1, keepdims=True)
    var = jnp.mean((y - mu) ** 2, axis=-1, keepdims=True)
    a = (y - mu) * jax.lax.rsqrt(var + eps) * g1_ref[...] + be1_ref[...]

    h = jnp.dot(a.astype(jnp.bfloat16), w1_ref[...],
                preferred_element_type=jnp.float32) + b1_ref[...]
    h = 0.5 * h * (1.0 + jnp.tanh(_GELU_C * (h + 0.044715 * h * h * h)))   # gelu_new

    z = jnp.dot(h.astype(jnp.bfloat16), w2_ref[...],
                preferred_element_type=jnp.float32) + b2_ref[...]
    z = z + a
    mu2 = jnp.mean(z, axis=-1, keepdims=True)
    var2 = jnp.mean((z - mu2) ** 2, axis=-1, keepdims=True)
    o_ref[...] = ((z - mu2) * jax.lax.rsqrt(var2 + eps) * g2_ref[...]
                  + be2_ref[...]).astype(o_ref.dtype)


def pallas_attn_out_ffn(ctx, resid, p, eps):
    """ctx, resid: [M, H] bf16 -> [M, H] bf16 (post-FFN LayerNorm output)."""
    M, H = ctx.shape
    I = p["ffn_w"].shape[1]
    tm = _row_tile(M)
    return pl.pallas_call(
        functools.partial(_attn_out_ffn_ln_kernel, eps=eps),
        out_shape=jax.ShapeDtypeStruct((M, H), jnp.bfloat16),
        grid=(M // tm,),
        in_specs=[
            pl.BlockSpec((tm, H), lambda i: (i, 0)),
            pl.BlockSpec((tm, H), lambda i: (i, 0)),
            pl.BlockSpec((H, H), lambda i: (0, 0)),
            pl.BlockSpec((1, H), lambda i: (0, 0)),
            pl.BlockSpec((1, H), lambda i: (0, 0)),
            pl.BlockSpec((1, H), lambda i: (0, 0)),
            pl.BlockSpec((H, I), lambda i: (0, 0)),
            pl.BlockSpec((1, I), lambda i: (0, 0)),
            pl.BlockSpec((I, H), lambda i: (0, 0)),
            pl.BlockSpec((1, H), lambda i: (0, 0)),
            pl.BlockSpec((1, H), lambda i: (0, 0)),
            pl.BlockSpec((1, H), lambda i: (0, 0)),
        ],
        out_specs=pl.BlockSpec((tm, H), lambda i: (i, 0)),
        compiler_params=pltpu.CompilerParams(
            dimension_semantics=("parallel",),
            vmem_limit_bytes=_VMEM_LIMIT),
    )(ctx, resid,
      p["ad_w"], p["ad_b"].reshape(1, H), p["a_ln_g"].reshape(1, H), p["a_ln_b"].reshape(1, H),
      p["ffn_w"], p["ffn_b"].reshape(1, I), p["ffo_w"], p["ffo_b"].reshape(1, H),
      p["f_ln_g"].reshape(1, H), p["f_ln_b"].reshape(1, H))


# ------------------------- highway head (plain JAX) -------------------------

def highway_exit(x, hp):
    """Pooler + classifier + entropy on the first token.  Tiny [B,H] x [H,L] GEMMs ->
    plain JAX per the perf review (a pallas_call here is pure dispatch overhead)."""
    first = x[:, 0, :].astype(jnp.float32)
    pre = first @ hp["p_w"] + hp["p_b"]
    pooled = jnp.tanh(pre)
    logits = pooled @ hp["c_w"] + hp["c_b"]
    # entropy(x) = log(sum exp x) - sum(x*exp x)/sum(exp x); shift-invariant -> stable.
    z = logits - jnp.max(logits, axis=1, keepdims=True)
    ez = jnp.exp(z)
    A = jnp.sum(ez, axis=1)
    Bsum = jnp.sum(z * ez, axis=1)
    ent = jnp.log(A) - Bsum / A                      # exact division (feeds exit threshold)
    return logits, pooled, ent


# --------------------------- model (plain-JAX glue) -------------------------

def albert_layer_forward(p, x, add_mask, cfg):
    B, S, H = x.shape
    nh = cfg["num_attention_heads"]
    d = H // nh
    ctx = pallas_qkv_attention(x, p["qkv_w"], p["qkv_b"], add_mask, nh, d)     # bf16
    out = pallas_attn_out_ffn(ctx.reshape(B * S, H), x.reshape(B * S, H), p,
                              cfg["layer_norm_eps"])                            # bf16
    return out.reshape(B, S, H)


def albert_transformer_forward(params, hidden_states, attention_mask, cfg):
    """Matches AlbertTransformer.forward in eval mode (no early exit taken)."""
    B, S, E = hidden_states.shape
    H = cfg["hidden_size"]

    x = pallas_linear(hidden_states.reshape(B * S, E),
                      params["emb_w"], params["emb_b"]).reshape(B, S, H)       # bf16

    # extended additive mask, BERT/ALBERT convention (0 keep, -1e4 drop)
    add_mask = (1.0 - attention_mask.astype(jnp.float32)) * -10000.0           # [B, S]

    all_highway_exits = ()
    L = cfg["num_hidden_layers"]
    G = cfg["num_hidden_groups"]
    for i in range(L):
        group_idx = int(i / (L / G))
        gp = params["groups"][group_idx]
        for layer_p in gp["layers"]:                      # inner_group_num layers
            x = albert_layer_forward(layer_p, x, add_mask, cfg)
        all_highway_exits += (highway_exit(x, params["highway"][group_idx]),)

    # final hidden returned as f32 for interface parity with the PyTorch module
    return (x.astype(jnp.float32),) + (all_highway_exits,)


# ------------------------------ parameter init ------------------------------

def _pack_qkv(q_w, k_w, v_w, q_b, k_b, v_b, num_heads, head_dim, hpg):
    """Pack Q/K/V weights head-group-major: -> ([ng, H, 3G] bf16, [ng, 1, 3G] f32)."""
    H = q_w.shape[0]
    ng = num_heads // hpg
    G = hpg * head_dim

    def wslab(w):
        return jnp.transpose(w.reshape(H, ng, G), (1, 0, 2))      # (ng, H, G)

    def bslab(b):
        return b.reshape(ng, 1, G)

    w = jnp.concatenate([wslab(q_w), wslab(k_w), wslab(v_w)], axis=-1)
    b = jnp.concatenate([bslab(q_b), bslab(k_b), bslab(v_b)], axis=-1)
    return w, b


def init_params(cfg, key):
    E, H = cfg["embedding_size"], cfg["hidden_size"]
    I, Lb = cfg["intermediate_size"], cfg["num_labels"]
    nh = cfg["num_attention_heads"]
    d = H // nh
    hpg = _heads_per_group(nh, d)

    def nrm(k, shape, dtype=jnp.bfloat16):
        # matmul weights stored bf16 (MXU-native); accumulation stays f32 in-kernel.
        # NOTE: not bit-exact vs the f32 PyTorch reference (~1e-2 rel); fine for inference.
        return (jax.random.normal(k, shape, dtype=jnp.float32) * 0.02).astype(dtype)

    keys = iter(jax.random.split(key, 256))
    params = {
        "emb_w": nrm(next(keys), (E, H)),
        "emb_b": jnp.zeros((H,), jnp.float32),
        "groups": [],
        "highway": [],
    }
    for _ in range(cfg["num_hidden_groups"]):
        layers = []
        for _ in range(cfg["inner_group_num"]):
            q_w = nrm(next(keys), (H, H))
            k_w = nrm(next(keys), (H, H))
            v_w = nrm(next(keys), (H, H))
            qkv_w, qkv_b = _pack_qkv(q_w, k_w, v_w,
                                     jnp.zeros((H,), jnp.float32),
                                     jnp.zeros((H,), jnp.float32),
                                     jnp.zeros((H,), jnp.float32),
                                     nh, d, hpg)
            layers.append({
                "qkv_w": qkv_w, "qkv_b": qkv_b,
                "ad_w": nrm(next(keys), (H, H)), "ad_b": jnp.zeros((H,), jnp.float32),
                "a_ln_g": jnp.ones((H,), jnp.float32), "a_ln_b": jnp.zeros((H,), jnp.float32),
                "ffn_w": nrm(next(keys), (H, I)), "ffn_b": jnp.zeros((I,), jnp.float32),
                "ffo_w": nrm(next(keys), (I, H)), "ffo_b": jnp.zeros((H,), jnp.float32),
                "f_ln_g": jnp.ones((H,), jnp.float32), "f_ln_b": jnp.zeros((H,), jnp.float32),
            })
        params["groups"].append({"layers": layers})
        params["highway"].append({
            "p_w": nrm(next(keys), (H, H), jnp.float32), "p_b": jnp.zeros((H,), jnp.float32),
            "c_w": nrm(next(keys), (H, Lb), jnp.float32), "c_b": jnp.zeros((Lb,), jnp.float32),
        })
    return params


# ----------------------------------- main ------------------------------------

if __name__ == "__main__":
    cfg = dict(
        embedding_size=16,
        hidden_size=32,
        num_attention_heads=4,
        intermediate_size=64,
        num_hidden_layers=2,
        num_hidden_groups=1,
        inner_group_num=1,
        num_labels=3,
        layer_norm_eps=1e-12,
    )

    key = jax.random.PRNGKey(0)
    k_param, k_x = jax.random.split(key)
    params = init_params(cfg, k_param)

    B, S = 2, 8
    hidden_states = jax.random.normal(k_x, (B, S, cfg["embedding_size"]),
                                      dtype=jnp.float32)
    attention_mask = jnp.ones((B, S), dtype=jnp.float32)

    outputs = albert_transformer_forward(params, hidden_states, attention_mask, cfg)
    final_hidden, highway_exits = outputs
    jax.block_until_ready(final_hidden)
    for exit_tuple in highway_exits:
        for t in exit_tuple:
            jax.block_until_ready(t)

    assert final_hidden.shape == (B, S, cfg["hidden_size"])
    assert final_hidden.dtype == jnp.float32
    assert len(highway_exits) == cfg["num_hidden_layers"]
    assert highway_exits[0][0].shape == (B, cfg["num_labels"])
    assert highway_exits[0][1].shape == (B, cfg["hidden_size"])
    assert highway_exits[0][2].shape == (B,)
    assert bool(jnp.all(jnp.isfinite(final_hidden)))
    assert all(bool(jnp.all(jnp.isfinite(t))) for e in highway_exits for t in e)
    print("KERNEL_OK")
</pallas_src>

<mosaic_0001>
module attributes {stable_mosaic.version = 11 : i64} {
  func.func @_linear_kernel(%arg0: i32, %arg1: memref<16x16xf32, #tpu.memory_space<vmem>>, %arg2: memref<16x32xbf16, #tpu.memory_space<vmem>>, %arg3: memref<1x32xf32, #tpu.memory_space<vmem>>, %arg4: memref<16x32xbf16, #tpu.memory_space<vmem>>) attributes {dimension_semantics = [#tpu.dimension_semantics<parallel>], iteration_bounds = array<i64: 1>, scalar_prefetch = 0 : i64, scratch_operands = 0 : i64, tpu.core_type = #tpu.core_type<tc>, window_params = [{transform_indices = @transform_0, window_bounds = array<i64: 16, 16>}, {pipeline_mode = #tpu.pipeline_mode<synchronous>, transform_indices = @transform_1, window_bounds = array<i64: 16, 32>}, {pipeline_mode = #tpu.pipeline_mode<synchronous>, transform_indices = @transform_2, window_bounds = array<i64: 1, 32>}, {transform_indices = @transform_3, window_bounds = array<i64: 16, 32>}]} {
    %c0 = arith.constant 0 : index
    %c0_0 = arith.constant 0 : index
    %0 = vector.load %arg1[%c0, %c0_0] : memref<16x16xf32, #tpu.memory_space<vmem>>, vector<16x16xf32>
    %1 = arith.truncf %0 : vector<16x16xf32> to vector<16x16xbf16>
    %c0_1 = arith.constant 0 : index
    %c0_2 = arith.constant 0 : index
    %2 = vector.load %arg2[%c0_1, %c0_2] : memref<16x32xbf16, #tpu.memory_space<vmem>>, vector<16x32xbf16>
    %cst = arith.constant dense<0.000000e+00> : vector<16x32xf32>
    %3 = tpu.matmul %1, %2, %cst {dimension_numbers = #tpu.dot_dimension_numbers<[1], [0], [0], [1], [0, 0, 1, 1], [], []>} : vector<16x16xbf16>, vector<16x32xbf16>, vector<16x32xf32> -> vector<16x32xf32>
    %c0_3 = arith.constant 0 : index
    %c0_4 = arith.constant 0 : index
    %4 = vector.load %arg3[%c0_3, %c0_4] : memref<1x32xf32, #tpu.memory_space<vmem>>, vector<1x32xf32>
    %5 = vector.broadcast %4 : vector<1x32xf32> to vector<16x32xf32>
    %6 = arith.addf %3, %5 : vector<16x32xf32>
    %7 = arith.truncf %6 : vector<16x32xf32> to vector<16x32xbf16>
    %c0_5 = arith.constant 0 : index
    %c0_6 = arith.constant 0 : index
    %8 = vector.load %arg4[%c0_5, %c0_6] : memref<16x32xbf16, #tpu.memory_space<vmem>>, vector<16x32xbf16>
    tpu.vector_store %arg4[%c0_5, %c0_6], %7 {strides = array<i32>} : memref<16x32xbf16, #tpu.memory_space<vmem>>, vector<16x32xbf16>,
    return
  }
  func.func @transform_0(%arg0: i32) -> (i32, i32) {
    %c0_i32 = arith.constant 0 : i32
    %c0_i32_0 = arith.constant 0 : i32
    return %arg0, %c0_i32 : i32, i32
  }
  func.func @transform_1(%arg0: i32) -> (i32, i32) {
    %c0_i32 = arith.constant 0 : i32
    %c0_i32_0 = arith.constant 0 : i32
    %c0_i32_1 = arith.constant 0 : i32
    return %c0_i32, %c0_i32_0 : i32, i32
  }
  func.func @transform_2(%arg0: i32) -> (i32, i32) {
    %c0_i32 = arith.constant 0 : i32
    %c0_i32_0 = arith.constant 0 : i32
    %c0_i32_1 = arith.constant 0 : i32
    return %c0_i32, %c0_i32_0 : i32, i32
  }
  func.func @transform_3(%arg0: i32) -> (i32, i32) {
    %c0_i32 = arith.constant 0 : i32
    %c0_i32_0 = arith.constant 0 : i32
    return %arg0, %c0_i32 : i32, i32
  }
}

</mosaic_0001>

<llo_original>
// kernel: tpu_custom_call.1
$region0: #{tpu_custom_call.1}
  #allocation0 [shape = 'u32[]', space=smem, size = 0x4, offset = 0x4, fixed_abs, tag = 'smem constant byte address 0x4 - core index']
  #allocation1 [shape = 'u32[72,128]{1,0:T(1,128)}', space=vmem, size = 0x9000, scoped, tag = 'internal scratch']
  %s0 = inlined_call_operand.hbm [shape: f32[16,16], index: 0, kind: input, shape index: {}]
  %s1 = inlined_call_operand.hbm [shape: bf16[16,32], index: 1, kind: input, shape index: {}]
  %s2 = inlined_call_operand.vmem [shape: f32[1,32], index: 2, kind: input, shape index: {}]
  %s3 = inlined_call_operand.hbm [shape: bf16[16,32], index: 3, kind: output, shape index: {}]
  %s4 = sld [smem:[#allocation0]]
  $region30: #{tpu_custom_call.1} parent=0
    _
  %s6 = ssub.s32 1, %s4
  %s7 = scalar_select 0, %s6, %s4
  $region1: #{tpu_custom_call.1} parent=0
    #allocation2 [shape = 'u8[8192]{0}', space=vmem, size = 0x2000, scoped, tag = 'input window, operand 0, single buffered']
    #allocation3 [shape = 's32[1]{0}', space=sflag, size = 0x4, scoped, tag = 'scoped memory for tpu_custom_call.1']
    #allocation4 [shape = 's32[1]{0}', space=sflag, size = 0x4, scoped, tag = 'scoped memory for tpu_custom_call.1']
    #allocation5 [shape = 'u8[4096]{0}', space=vmem, size = 0x1000, scoped, tag = 'input window, operand 1, single buffered']
    #allocation6 [shape = 's32[1]{0}', space=sflag, size = 0x4, scoped, tag = 'scoped memory for tpu_custom_call.1']
    #allocation7 [shape = 'u8[4096]{0}', space=vmem, size = 0x1000, scoped, tag = 'output window, operand 0, single buffered']
    %8 = vsyncpa [#allocation3], 0
    %9 = vsyncpa [#allocation6], 0
    %10 = vsyncpa [#allocation4], 0
    // Predicated region
    $region2: #{tpu_custom_call.1} parent=1 // pred_check
      _
    $region3: #{tpu_custom_call.1} parent=1 // pred_check_branch
      %12 = sbr.rel (0) target = $region5
    $region4: #{tpu_custom_call.1} parent=1 // pred_region
      %14 = vsyncadd [#allocation3], 0
      %s15 = sshll.u32 %s0, 4
      %s16 = int_to_ptr.hbm [resolvable:$true] %s15
      %s17 = sshll.u32 [#allocation2], 4
      %s18 = int_to_ptr.vmem [resolvable:$true] %s17
      %23 = dma.hbm_to_vmem [thread:$0]  %s16, 256, %s18, [#allocation3], 128, 128, 8
    $region5: #{tpu_custom_call.1} parent=1 // pred_fallthru
      _
    // Predicated region
    $region6: #{tpu_custom_call.1} parent=1 // pred_check
      _
    $region7: #{tpu_custom_call.1} parent=1 // pred_check_branch
      %25 = sbr.rel (0) target = $region9
    $region8: #{tpu_custom_call.1} parent=1 // pred_region
      %27 = vsyncadd [#allocation6], 0
      %s28 = sshll.u32 %s1, 4
      %s29 = int_to_ptr.hbm [resolvable:$true] %s28
      %s30 = sshll.u32 [#allocation5], 4
      %s31 = int_to_ptr.vmem [resolvable:$true] %s30
      %36 = dma.hbm_to_vmem [thread:$0]  %s29, 128, %s31, [#allocation6], 64, 64, 4
    $region9: #{tpu_custom_call.1} parent=1 // pred_fallthru
      _
    // Predicated region
    $region10: #{tpu_custom_call.1} parent=1 // pred_check
      _
    $region11: #{tpu_custom_call.1} parent=1 // pred_check_branch
      %38 = sbr.rel (0) target = $region13
    $region12: #{tpu_custom_call.1} parent=1 // pred_region
      _
    $region13: #{tpu_custom_call.1} parent=1 // pred_fallthru
      _
    // Predicated region
    $region14: #{tpu_custom_call.1} parent=1 // pred_check
      _
    $region15: #{tpu_custom_call.1} parent=1 // pred_check_branch
      %40 = sbr.rel (0) target = $region17
    $region16: #{tpu_custom_call.1} parent=1 // pred_region
      %42 = dma.done [#allocation3], 256
    $region17: #{tpu_custom_call.1} parent=1 // pred_fallthru
      _
    // Predicated region
    $region18: #{tpu_custom_call.1} parent=1 // pred_check
      _
    $region19: #{tpu_custom_call.1} parent=1 // pred_check_branch
      %44 = sbr.rel (0) target = $region21
    $region20: #{tpu_custom_call.1} parent=1 // pred_region
      %46 = dma.done [#allocation6], 128
    $region21: #{tpu_custom_call.1} parent=1 // pred_fallthru
      _
    %v48 = vld [vmem:[#allocation2] sm:$0xff]
    %v49 = vld [vmem:[#allocation2 + $0x8] sm:$0xff]
    %v50 = vpack.c.bf16 %v49, %v48
    %v51 = vld [vmem:[#allocation5] sm:$0xf]
    %v52 = vld [vmem:[#allocation5 + $0x4] sm:$0xf]
    %v53 = vld [vmem:[%s2] sm:$0x1]
    %v55 = vperm.slane %v53, 0
    %v59 = vunpack.c.l.b16 %v51
    %v60 = vunpack.c.l.b16 %v52
    %v61 = vpack.c.b16 %v60, %v59
    %vm63 = vcmask 130048
    %v65 = vsel %vm63, %v50, 0
    %67 = vmatpush.bf16.msra.mxu0 0
    %68 = vmatpush.bf16.msra.mxu0 0
    %69 = vmatpush.bf16.msra.mxu0 0
    %70 = vmatpush.bf16.msra.mxu0 0
    %71 = vmatpush.bf16.msra.mxu0 0
    %72 = vmatpush.bf16.msra.mxu0 0
    %73 = vmatpush.bf16.msra.mxu0 0
    %74 = vmatpush.bf16.msra.mxu0 %v61
    %75 = vmatmul.bf16.gmra.mxu0 %v65
    %v76 = vpop.f32.mrf.mxu0
    %v77 = vadd.f32 %v55, %v76
    %v78 = vpop.f32.mrf.mxu0
    %v79 = vadd.f32 %v55, %v78
    %80 = vdwg.mxu0
    %v81 = vpack.c.bf16 %v77, %v77
    %v82 = vpack.c.bf16 %v79, %v79
    %vm83 = vcmask 257024
    %84 = vst.msk [vmem:[#allocation7] sm:$0xf] %vm83, %v81
    %85 = vst.msk [vmem:[#allocation7 + $0x4] sm:$0xf] %vm83, %v82
    // Predicated region
    $region22: #{tpu_custom_call.1} parent=1 // pred_check
      _
    $region23: #{tpu_custom_call.1} parent=1 // pred_check_branch
      %87 = sbr.rel (0) target = $region25
    $region24: #{tpu_custom_call.1} parent=1 // pred_region
      %89 = vsyncadd [#allocation4], 0
      %s90 = sshll.u32 [#allocation7], 4
      %s91 = int_to_ptr.vmem [resolvable:$true] %s90
      %s92 = sshll.u32 %s3, 4
      %s93 = int_to_ptr.hbm [resolvable:$true] %s92
      %98 = dma.vmem_to_hbm [thread:$0]  %s91, 128, %s93, [#allocation4], 64, 64, 4
    $region25: #{tpu_custom_call.1} parent=1 // pred_fallthru
      _
    // Predicated region
    $region26: #{tpu_custom_call.1} parent=1 // pred_check
      _
    $region27: #{tpu_custom_call.1} parent=1 // pred_check_branch
      %100 = sbr.rel (0) target = $region29
    $region28: #{tpu_custom_call.1} parent=1 // pred_region
      %102 = dma.done [#allocation4], 128
    $region29: #{tpu_custom_call.1} parent=1 // pred_fallthru
      _
    %103 = vsyncpa [#allocation3], 1
    %104 = vsyncpa [#allocation6], 1
    %105 = vsyncpa [#allocation4], 1

</llo_original>
